<compile_context>
chip_gen: v5e
topology: v5e:2x2
jax: 0.10.0
libtpu: 0.0.40
codegen_flags: <defaults>
</compile_context>

<pallas_src>
import functools

import jax
import jax.numpy as jnp
from jax.experimental import pallas as pl
from jax.experimental.pallas import tpu as pltpu


LANE = 384            # lanes per row = 3 * 128  ->  128 interleaved points per row
MAX_TILE_ROWS = 1024  # rows per grid step: 1024 * 384 * 4 B = 1.5 MiB per block
CHUNK = 64            # rows per in-kernel compute slab (bounds vreg live ranges)


# ----------------------------------------------------------------------------
# Plain-JAX glue: the 3x3 Rodrigues matrix (matches cal_R of the PyTorch module).
# ----------------------------------------------------------------------------
def cal_R(axis, angle):
    axis = axis / jnp.linalg.norm(axis, ord=2)
    a, b, c = axis[0], axis[1], axis[2]
    t = jnp.reshape(angle, ())
    cos_t = jnp.cos(t)
    sin_t = jnp.sin(t)
    omc = 1.0 - cos_t
    row0 = jnp.stack([cos_t + a * a * omc, a * b * omc - c * sin_t, b * sin_t + a * c * omc])
    row1 = jnp.stack([c * sin_t + a * b * omc, cos_t + b * b * omc, -a * sin_t + b * c * omc])
    row2 = jnp.stack([-b * sin_t + a * c * omc, a * sin_t + b * c * omc, cos_t + c * c * omc])
    return jnp.stack([row0, row1, row2])


# ----------------------------------------------------------------------------
# One-time 128-lane probe: pin down pltpu.roll's rotation direction so the
# banded coefficients are paired with the right shifted copy regardless of the
# rotate convention.  (Expected: pltpu.roll == jnp.roll, i.e. roll(x, 1)[l] ==
# x[l-1]; the probe makes the kernel robust either way.)
# ----------------------------------------------------------------------------
@functools.lru_cache(maxsize=None)
def _roll_matches_jnp_roll() -> bool:
    def probe_kernel(x_ref, o_ref):
        o_ref[...] = pltpu.roll(x_ref[...], 1, axis=1)

    x = jnp.arange(128, dtype=jnp.float32).reshape(1, 128)
    out = pl.pallas_call(
        probe_kernel, out_shape=jax.ShapeDtypeStruct((1, 128), jnp.float32)
    )(x)
    return bool(out[0, 0] == 127.0)


# ----------------------------------------------------------------------------
# Period-3 lane-coefficient table (6, LANE), float32:
#   row 0: diag            -> multiplies z[l]
#   row 1: pairs with pltpu.roll(z, 1)
#   row 2: pairs with pltpu.roll(z, 2)
#   row 3: pairs with pltpu.roll(z, LANE-1)
#   row 4: pairs with pltpu.roll(z, LANE-2)
#   row 5: origin pattern [o0, o1, o2, o0, ...]
# ----------------------------------------------------------------------------
def _build_coeffs(R, origin):
    R = R.astype(jnp.float32)
    o = jnp.reshape(origin, (3,)).astype(jnp.float32)
    zero = jnp.zeros((), jnp.float32)
    j = jnp.arange(LANE) % 3  # lane -> coordinate index

    def lane_pattern(v0, v1, v2):
        return jnp.take(jnp.stack([v0, v1, v2]), j)

    c_diag = lane_pattern(R[0, 0], R[1, 1], R[2, 2])
    c_m1 = lane_pattern(zero, R[1, 0], R[2, 1])    # multiplies z[l-1]
    c_m2 = lane_pattern(zero, zero, R[2, 0])       # multiplies z[l-2]
    c_p1 = lane_pattern(R[0, 1], R[1, 2], zero)    # multiplies z[l+1]
    c_p2 = lane_pattern(R[0, 2], zero, zero)       # multiplies z[l+2]
    o_pat = lane_pattern(o[0], o[1], o[2])

    if _roll_matches_jnp_roll():
        rows = [c_diag, c_m1, c_m2, c_p1, c_p2, o_pat]   # roll(z, k)[l] == z[l-k]
    else:
        rows = [c_diag, c_p1, c_p2, c_m1, c_m2, o_pat]   # roll(z, k)[l] == z[l+k]
    return jnp.stack(rows)


# ----------------------------------------------------------------------------
# Pallas kernel: banded multiply over the interleaved (tile_rows, 384) block.
# Pure VPU + XLU; no MXU, no cross-sublane traffic.
# ----------------------------------------------------------------------------
def rodrigues_kernel(coef_ref, x_ref, o_ref):
    c_diag = coef_ref[0:1, :]
    c_r1 = coef_ref[1:2, :]
    c_r2 = coef_ref[2:3, :]
    c_r3 = coef_ref[3:4, :]
    c_r4 = coef_ref[4:5, :]
    org = coef_ref[5:6, :]

    def compute_slab(x_slab):
        z = x_slab.astype(jnp.float32) - org
        y = c_diag * z
        y = y + c_r1 * pltpu.roll(z, 1, axis=1)
        y = y + c_r2 * pltpu.roll(z, 2, axis=1)
        y = y + c_r3 * pltpu.roll(z, LANE - 1, axis=1)
        y = y + c_r4 * pltpu.roll(z, LANE - 2, axis=1)
        return (y + org).astype(o_ref.dtype)

    rows = x_ref.shape[0]          # static (block shape)
    n_full = rows // CHUNK
    rem = rows % CHUNK

    if n_full > 0:
        @pl.loop(0, n_full)
        def _(i):
            r0 = pl.multiple_of(i * CHUNK, CHUNK)
            o_ref[pl.ds(r0, CHUNK), :] = compute_slab(x_ref[pl.ds(r0, CHUNK), :])

    if rem > 0:                    # static epilogue for a ragged block height
        r0 = n_full * CHUNK
        o_ref[r0:r0 + rem, :] = compute_slab(x_ref[r0:r0 + rem, :])


# ----------------------------------------------------------------------------
# Wrapper: y = (x - origin) @ R^T + origin for x of shape (..., 3).
# ----------------------------------------------------------------------------
def rodrigues_transform(x, axis, angle, origin, *, max_tile_rows=MAX_TILE_ROWS):
    orig_shape = x.shape
    assert orig_shape[-1] == 3, "last axis must be xyz"
    dtype = x.dtype

    coeffs = _build_coeffs(cal_R(axis, angle), origin)   # (6, LANE) f32, ~9 KiB

    flat = x.reshape(-1)                                  # free (row-major view)
    total = flat.shape[0]
    rows = pl.cdiv(total, LANE)
    padded = rows * LANE
    if padded != total:
        # TODO(synk): this pad (and the matching slice below) costs one extra HBM
        # pass; callers whose point count is a multiple of 128 get a zero-copy wrapper.
        flat = jnp.pad(flat, (0, padded - total))
    x2d = flat.reshape(rows, LANE)                         # free (row-major view)

    tile_rows = rows if rows <= max_tile_rows else max_tile_rows
    grid = (pl.cdiv(rows, tile_rows),)

    y2d = pl.pallas_call(
        rodrigues_kernel,
        out_shape=jax.ShapeDtypeStruct((rows, LANE), dtype),
        grid_spec=pltpu.PrefetchScalarGridSpec(
            num_scalar_prefetch=0,
            grid=grid,
            in_specs=[
                pl.BlockSpec((6, LANE), lambda i: (0, 0)),           # coef table (resident)
                pl.BlockSpec((tile_rows, LANE), lambda i: (i, 0)),   # interleaved points
            ],
            out_specs=pl.BlockSpec((tile_rows, LANE), lambda i: (i, 0)),
        ),
        compiler_params=pltpu.CompilerParams(
            dimension_semantics=("parallel",),
        ),
    )(coeffs, x2d)

    y_flat = y2d.reshape(-1)
    if padded != total:
        y_flat = y_flat[:total]
    return y_flat.reshape(orig_shape)


# ----------------------------------------------------------------------------
# Pure-JAX reference (mirrors the PyTorch forward).
# ----------------------------------------------------------------------------
def rodrigues_reference(x, axis, angle, origin):
    R = cal_R(axis, angle)
    o = jnp.reshape(origin, (1, 3))
    return jnp.matmul(x - o, R.T) + o


if __name__ == "__main__":
    key = jax.random.PRNGKey(0)
    k_axis, k_origin, k_x1, k_x2 = jax.random.split(key, 4)

    # Parameters (shapes per RodrigueRotationTransform3D.__init__):
    #   axis: (3,)  angle: (1,)  origin: (1, 3) — non-trivial values so the
    #   rotation actually does work.
    axis = jax.random.uniform(k_axis, (3,), dtype=jnp.float32) + 0.1
    angle = jnp.array([0.7], dtype=jnp.float32)
    origin = jax.random.normal(k_origin, (1, 3), dtype=jnp.float32) * 0.1

    # Aligned case: 2 x 64 = 128 points -> exactly one 384-lane row (zero-copy wrapper).
    x1 = jax.random.normal(k_x1, (2, 64, 3), dtype=jnp.float32)
    y1 = jax.block_until_ready(rodrigues_transform(x1, axis, angle, origin))
    assert y1.shape == x1.shape
    assert jnp.allclose(y1, rodrigues_reference(x1, axis, angle, origin),
                        atol=1e-5, rtol=1e-5), "mismatch vs reference (aligned)"

    # Ragged case: 37 points -> exercises the 128-point pad + partial row.
    x2 = jax.random.normal(k_x2, (1, 37, 3), dtype=jnp.float32)
    y2 = jax.block_until_ready(rodrigues_transform(x2, axis, angle, origin))
    assert y2.shape == x2.shape
    assert jnp.allclose(y2, rodrigues_reference(x2, axis, angle, origin),
                        atol=1e-5, rtol=1e-5), "mismatch vs reference (ragged)"

    print("KERNEL_OK")
</pallas_src>

<mosaic_0001>
module attributes {stable_mosaic.version = 11 : i64} {
  func.func @probe_kernel(%arg0: memref<1x128xf32, #tpu.memory_space<vmem>>, %arg1: memref<1x128xf32, #tpu.memory_space<vmem>>) attributes {dimension_semantics = [], scalar_prefetch = 0 : i64, scratch_operands = 0 : i64, tpu.core_type = #tpu.core_type<tc>} {
    %c0 = arith.constant 0 : index
    %c0_0 = arith.constant 0 : index
    %0 = vector.load %arg0[%c0, %c0_0] : memref<1x128xf32, #tpu.memory_space<vmem>>, vector<1x128xf32>
    %c1_i32 = arith.constant 1 : i32
    %1 = tpu.dynamic_rotate %0 by %c1_i32 dim 1 : vector<1x128xf32>, i32 -> vector<1x128xf32>
    %c0_1 = arith.constant 0 : index
    %c0_2 = arith.constant 0 : index
    %2 = vector.load %arg1[%c0_1, %c0_2] : memref<1x128xf32, #tpu.memory_space<vmem>>, vector<1x128xf32>
    tpu.vector_store %arg1[%c0_1, %c0_2], %1 {strides = array<i32>} : memref<1x128xf32, #tpu.memory_space<vmem>>, vector<1x128xf32>,
    return
  }
}

</mosaic_0001>

<llo_original>
// kernel: tpu_custom_call.1
$region0: #{tpu_custom_call.1}
  #allocation0 [shape = 'u32[]', space=smem, size = 0x4, offset = 0x4, fixed_abs, tag = 'smem constant byte address 0x4 - core index']
  #allocation1 [shape = 'u32[72,128]{1,0:T(1,128)}', space=vmem, size = 0x9000, scoped, tag = 'internal scratch']
  %s0 = inlined_call_operand.hbm [shape: f32[1,128], index: 0, kind: input, shape index: {}]
  %s1 = inlined_call_operand.hbm [shape: f32[1,128], index: 1, kind: output, shape index: {}]
  %s2 = sld [smem:[#allocation0]]
  $region18: #{tpu_custom_call.1} parent=0
    _
  %s4 = ssub.s32 1, %s2
  %s5 = scalar_select 0, %s4, %s2
  $region1: #{tpu_custom_call.1} parent=0
    #allocation2 [shape = 'u8[512]{0}', space=vmem, size = 0x400, scoped, tag = 'input window, operand 0, single buffered']
    #allocation3 [shape = 's32[1]{0}', space=sflag, size = 0x4, scoped, tag = 'scoped memory for tpu_custom_call.1']
    #allocation4 [shape = 's32[1]{0}', space=sflag, size = 0x4, scoped, tag = 'scoped memory for tpu_custom_call.1']
    #allocation5 [shape = 'u8[512]{0}', space=vmem, size = 0x400, scoped, tag = 'output window, operand 0, single buffered']
    %6 = vsyncpa [#allocation3], 0
    %7 = vsyncpa [#allocation4], 0
    // Predicated region
    $region2: #{tpu_custom_call.1} parent=1 // pred_check
      _
    $region3: #{tpu_custom_call.1} parent=1 // pred_check_branch
      %9 = sbr.rel (0) target = $region5
    $region4: #{tpu_custom_call.1} parent=1 // pred_region
      %11 = vsyncadd [#allocation3], 0
      %s13 = sshll.u32 %s0, 4
      %s14 = int_to_ptr.hbm [resolvable:$true] %s13
      %s15 = sshll.u32 [#allocation2], 4
      %s16 = int_to_ptr.vmem [resolvable:$true] %s15
      %18 = dma.hbm_to_vmem [thread:$0]  %s14, 16, %s16, [#allocation3]
    $region5: #{tpu_custom_call.1} parent=1 // pred_fallthru
      _
    // Predicated region
    $region6: #{tpu_custom_call.1} parent=1 // pred_check
      _
    $region7: #{tpu_custom_call.1} parent=1 // pred_check_branch
      %20 = sbr.rel (0) target = $region9
    $region8: #{tpu_custom_call.1} parent=1 // pred_region
      %22 = dma.done [#allocation3], 16
    $region9: #{tpu_custom_call.1} parent=1 // pred_fallthru
      _
    %v23 = vld [vmem:[#allocation2] sm:$0x1]
    %24 = vrot.lane.b32.xlu0 %v23, 1
    %v25 = vpop.permute.xlu0 %24
    %26 = vst [vmem:[#allocation5] sm:$0x1] %v25
    // Predicated region
    $region10: #{tpu_custom_call.1} parent=1 // pred_check
      _
    $region11: #{tpu_custom_call.1} parent=1 // pred_check_branch
      %28 = sbr.rel (0) target = $region13
    $region12: #{tpu_custom_call.1} parent=1 // pred_region
      %30 = vsyncadd [#allocation4], 0
      %s32 = sshll.u32 [#allocation5], 4
      %s33 = int_to_ptr.vmem [resolvable:$true] %s32
      %s34 = sshll.u32 %s1, 4
      %s35 = int_to_ptr.hbm [resolvable:$true] %s34
      %37 = dma.vmem_to_hbm [thread:$0]  %s33, 16, %s35, [#allocation4]
    $region13: #{tpu_custom_call.1} parent=1 // pred_fallthru
      _
    // Predicated region
    $region14: #{tpu_custom_call.1} parent=1 // pred_check
      _
    $region15: #{tpu_custom_call.1} parent=1 // pred_check_branch
      %39 = sbr.rel (0) target = $region17
    $region16: #{tpu_custom_call.1} parent=1 // pred_region
      %41 = dma.done [#allocation4], 16
    $region17: #{tpu_custom_call.1} parent=1 // pred_fallthru
      _
    %42 = vsyncpa [#allocation3], 1
    %43 = vsyncpa [#allocation4], 1

</llo_original>
